<compile_context>
chip_gen: v7x
topology: tpu7x:2x2x1
jax: 0.10.0
libtpu: 0.0.40
codegen_flags: <defaults>
</compile_context>

<pallas_src>
import math
from functools import partial

import jax
import jax.numpy as jnp
from jax.experimental import pallas as pl
from jax.experimental.pallas import tpu as pltpu

_VMEM_LIMIT = 40 * 1024 * 1024


# ----------------------------------------------------------------------------------
# Pallas kernel 1: 3x3x3 conv as 27 in-kernel tap matmuls over a resident bf16 buffer.
# The padded input is flattened channels-last to rows of the PADDED grid; tap
# (a,kb,kc) contributes the same rows shifted by (a*Hp+kb)*Wp+kc, so each tap is one
# row-window matmul fed straight from VMEM.  Padded-border output rows are garbage
# and dropped by the wrapper; valid rows are exact.
# ----------------------------------------------------------------------------------
def _conv3d_kernel(x_hbm, w_ref, b_ref, o_ref, xbuf, acc_ref, sem,
                   *, hp, wp, m_rows, n_taps):
    # Load the padded/flattened input into VMEM exactly once; the cout-tile grid
    # axis is "arbitrary" (sequential), so later tiles reuse the resident copy.
    @pl.when(pl.program_id(0) == 0)
    def _load_input():
        cp = pltpu.make_async_copy(x_hbm, xbuf, sem)
        cp.start()
        cp.wait()

    acc_ref[...] = jnp.zeros_like(acc_ref)
    for t in range(n_taps):                       # statically unrolled 27-tap loop
        off = ((t // 9) * hp + (t // 3) % 3) * wp + (t % 3)
        a = xbuf[pl.ds(off, m_rows), :]           # bf16 row window, no copy
        acc_ref[...] += jnp.dot(a, w_ref[t], preferred_element_type=jnp.float32)

    o_ref[...] = (acc_ref[...] + b_ref[...]).astype(o_ref.dtype)


def _pick_cout_tile(cin, cout):
    budget = 24 * 1024 * 1024                     # double-buffered weight block cap
    for t in (512, 256, 128):
        if cout % t == 0 and 2 * 27 * cin * t * 2 <= budget:
            return t
    return cout                                   # e.g. final 3-channel conv


@partial(jax.jit, static_argnames=("stride_hw", "out_f32"))
def _conv3d(x, w, b, *, stride_hw, out_f32):
    kk, cin, cout = w.shape                       # (27, Cin, Cout), bf16 weights
    B, F, H, W, _ = x.shape
    Fp, Hp, Wp = F + 2, H + 2, W + 2
    m = B * Fp * Hp * Wp                          # rows of the padded grid
    omax = (2 * Hp + 2) * Wp + 2                  # max tap row offset
    pad_rows = omax + (-(m + omax)) % 16
    n_rows = m + pad_rows

    # TODO(synk): fold the zero padding into the kernel (zero xbuf, DMA interior
    # rows only) to drop these two small XLA pad copies and the padded-row waste.
    xp = jnp.pad(x.astype(jnp.bfloat16), ((0, 0), (1, 1), (1, 1), (1, 1), (0, 0)))
    xf = jnp.pad(xp.reshape(m, cin), ((0, pad_rows), (0, 0)))

    tco = _pick_cout_tile(cin, cout)
    out_dtype = jnp.float32 if out_f32 else jnp.bfloat16

    y = pl.pallas_call(
        partial(_conv3d_kernel, hp=Hp, wp=Wp, m_rows=m, n_taps=kk),
        out_shape=jax.ShapeDtypeStruct((m, cout), out_dtype),
        grid=(cout // tco,),
        in_specs=[
            pl.BlockSpec(memory_space=pl.ANY),                   # raw HBM input
            pl.BlockSpec((kk, cin, tco), lambda co: (0, 0, co)),  # all 27 taps
            pl.BlockSpec((1, tco), lambda co: (0, co)),           # bias
        ],
        out_specs=pl.BlockSpec((m, tco), lambda co: (0, co)),
        scratch_shapes=[
            pltpu.VMEM((n_rows, cin), jnp.bfloat16),  # resident padded input
            pltpu.VMEM((m, tco), jnp.float32),        # f32 accumulator
            pltpu.SemaphoreType.DMA(()),
        ],
        # "arbitrary" keeps the single input load valid; TODO(synk): add a parallel
        # row-split axis so both v7x TensorCores are busy.
        compiler_params=pltpu.CompilerParams(
            dimension_semantics=("arbitrary",),
            vmem_limit_bytes=_VMEM_LIMIT),
    )(xf, w, b.reshape(1, cout))

    y = y.reshape(B, Fp, Hp, Wp, cout)
    if stride_hw == 2:
        # TODO(synk): gather only even output positions inside the kernel instead of
        # computing the full-resolution conv and subsampling here.
        return y[:, :F, :H:2, :W:2, :]
    return y[:, :F, :H, :W, :]


def conv3d(x, p, stride_hw=1, out_f32=False):
    w, b = p
    return _conv3d(x, w, b, stride_hw=stride_hw, out_f32=out_f32)


# ----------------------------------------------------------------------------------
# Pallas kernel 2: tiled matmul with in-kernel bf16 cast and fused bias (+ SiLU).
# Used for 1x1x1 convs, qkv / proj projections and the time / task embedding MLPs.
# ----------------------------------------------------------------------------------
def _matmul_kernel(a_ref, w_ref, bias_ref, o_ref, acc_ref, *, act):
    @pl.when(pl.program_id(2) == 0)
    def _init():
        acc_ref[...] = jnp.zeros_like(acc_ref)

    acc_ref[...] += jnp.dot(a_ref[...].astype(jnp.bfloat16), w_ref[...],
                            preferred_element_type=jnp.float32)

    @pl.when(pl.program_id(2) == pl.num_programs(2) - 1)
    def _epilogue():
        y = acc_ref[...] + bias_ref[...]
        if act == "silu":
            y = y * jax.nn.sigmoid(y)
        o_ref[...] = y.astype(o_ref.dtype)


def _pick_tile(n, cap):
    for t in (512, 384, 256, 128):
        if t <= cap and n % t == 0:
            return t
    return n                                      # full dim (e.g. M=2 embedding GEMMs)


@partial(jax.jit, static_argnames=("act", "out_dtype"))
def _matmul_bias(a, w, bias, *, act, out_dtype):
    M, K = a.shape
    _, N = w.shape
    tm = _pick_tile(M, 256)
    tk = _pick_tile(K, 512)
    tn = _pick_tile(N, 512)
    return pl.pallas_call(
        partial(_matmul_kernel, act=act),
        out_shape=jax.ShapeDtypeStruct((M, N), out_dtype),
        grid=(M // tm, N // tn, K // tk),
        in_specs=[
            pl.BlockSpec((tm, tk), lambda i, j, k: (i, k)),
            pl.BlockSpec((tk, tn), lambda i, j, k: (k, j)),
            pl.BlockSpec((1, tn), lambda i, j, k: (0, j)),
        ],
        out_specs=pl.BlockSpec((tm, tn), lambda i, j, k: (i, j)),
        scratch_shapes=[pltpu.VMEM((tm, tn), jnp.float32)],
        compiler_params=pltpu.CompilerParams(
            dimension_semantics=("parallel", "parallel", "arbitrary"),
            vmem_limit_bytes=_VMEM_LIMIT),
    )(a, w, bias.reshape(1, N))


def matmul_bias(a, w, bias, act="none", out_dtype=jnp.bfloat16):
    return _matmul_bias(a, w, bias, act=act, out_dtype=out_dtype)


def linear(x, p, act="none"):                     # embedding-path GEMMs stay f32
    w, b = p
    return matmul_bias(x, w, b, act=act, out_dtype=jnp.float32)


def conv1x1(x, p):                                # 1x1x1 conv == per-position linear
    w, b = p
    sh = x.shape
    y = matmul_bias(x.reshape(-1, sh[-1]), w, b)
    return y.reshape(sh[:-1] + (w.shape[1],))


# ----------------------------------------------------------------------------------
# Pallas kernel 3: GroupNorm(32) (+ optional fused SiLU + fused per-batch channel
# shift, i.e. the ResBlock time-embedding add), channels-last, bf16 I/O, f32 stats.
# One invocation handles the full (B, S, C) tensor; per-group statistics via a tiny
# 0/1 group-assignment matmul so everything stays lane-dense.
# ----------------------------------------------------------------------------------
def _gn_kernel(x_ref, add_ref, g_ref, b_ref, gm_ref, gmt_ref, o_ref,
               *, inv_cnt, eps, apply_silu):
    x = x_ref[...].astype(jnp.float32) + add_ref[...][:, None, :]   # (B, S, C)
    s1 = jnp.sum(x, axis=1)                                         # (B, C)
    s2 = jnp.sum(x * x, axis=1)
    gs1 = jnp.dot(s1, gm_ref[...], preferred_element_type=jnp.float32)   # (B, G)
    gs2 = jnp.dot(s2, gm_ref[...], preferred_element_type=jnp.float32)
    mean = gs1 * inv_cnt
    var = jnp.maximum(gs2 * inv_cnt - mean * mean, 0.0)
    rstd = jax.lax.rsqrt(var + eps)
    mean_c = jnp.dot(mean, gmt_ref[...], preferred_element_type=jnp.float32)  # (B, C)
    rstd_c = jnp.dot(rstd, gmt_ref[...], preferred_element_type=jnp.float32)
    y = (x - mean_c[:, None, :]) * (rstd_c[:, None, :] * g_ref[...][None]) \
        + b_ref[...][None]
    if apply_silu:
        y = y * jax.nn.sigmoid(y)
    o_ref[...] = y.astype(o_ref.dtype)


@partial(jax.jit, static_argnames=("apply_silu",))
def _group_norm(xr, add, g, b, *, apply_silu):
    B, S, C = xr.shape
    G = 32
    cg = C // G
    gm = jnp.repeat(jnp.eye(G, dtype=jnp.float32), cg, axis=0)      # (C, G)
    return pl.pallas_call(
        partial(_gn_kernel, inv_cnt=1.0 / (S * cg), eps=1e-5, apply_silu=apply_silu),
        out_shape=jax.ShapeDtypeStruct((B, S, C), jnp.bfloat16),
        compiler_params=pltpu.CompilerParams(vmem_limit_bytes=_VMEM_LIMIT),
    )(xr, add, g.reshape(1, C), b.reshape(1, C), gm, gm.T)


def group_norm(x, p, apply_silu, add=None):
    gamma, beta = p
    B, C = x.shape[0], x.shape[-1]
    S = math.prod(x.shape[1:-1])
    if add is None:
        add = jnp.zeros((B, C), jnp.float32)
    y = _group_norm(x.reshape(B, S, C), add, gamma, beta, apply_silu=apply_silu)
    return y.reshape(x.shape)


# ----------------------------------------------------------------------------------
# Pallas kernel 4: multi-head QKV attention (QKVAttentionLegacy scaling), no XLA
# transposes.  qkv is (B, T, 3C) with [q|k|v] head-major columns; each grid step
# handles one batch element and one 128-lane head-group (4 heads of 32 channels).
# Heads are isolated with lane masks (exact per-head scores), softmax is f32 with an
# approx reciprocal, and the output block is a lane-dense (T, 128) write directly in
# the layout the proj matmul consumes.
# ----------------------------------------------------------------------------------
def _attn_kernel(q_ref, k_ref, v_ref, o_ref, *, ch, scale):
    q = q_ref[0]                                   # (T, 128) bf16, 4 heads side by side
    k = k_ref[0]
    v = v_ref[0]
    t_len, lanes = q.shape
    lane = jax.lax.broadcasted_iota(jnp.int32, (t_len, lanes), 1)
    acc = jnp.zeros((t_len, lanes), jnp.float32)
    for h in range(lanes // ch):
        msk = jnp.logical_and(lane >= h * ch, lane < (h + 1) * ch)
        qh = jnp.where(msk, q, jnp.zeros_like(q))  # zero other heads' lanes
        s = jnp.einsum("qc,kc->qk", qh, k,
                       preferred_element_type=jnp.float32) * scale
        s = s - jnp.max(s, axis=-1, keepdims=True)
        p = jnp.exp(s)
        p = p * pl.reciprocal(jnp.sum(p, axis=-1, keepdims=True), approx=True)
        vh = jnp.where(msk, v, jnp.zeros_like(v))  # output lands in head-h columns
        acc = acc + jnp.dot(p.astype(jnp.bfloat16), vh,
                            preferred_element_type=jnp.float32)
    o_ref[0] = acc.astype(o_ref.dtype)


@partial(jax.jit, static_argnames=("num_heads",))
def pallas_attention(qkv, num_heads):
    B, T, C3 = qkv.shape
    C = C3 // 3
    ch = C // num_heads
    assert C % 128 == 0 and 128 % ch == 0, (C, ch)
    nchunk = C // 128
    scale = 1.0 / math.sqrt(ch)

    def _spec(off):
        return pl.BlockSpec((1, T, 128), lambda b, g: (b, 0, g + off))

    return pl.pallas_call(
        partial(_attn_kernel, ch=ch, scale=scale),
        out_shape=jax.ShapeDtypeStruct((B, T, C), jnp.bfloat16),
        grid=(B, nchunk),
        in_specs=[_spec(0), _spec(nchunk), _spec(2 * nchunk)],   # q, k, v chunks
        out_specs=pl.BlockSpec((1, T, 128), lambda b, g: (b, 0, g)),
        compiler_params=pltpu.CompilerParams(
            dimension_semantics=("parallel", "parallel"),
            vmem_limit_bytes=_VMEM_LIMIT),
    )(qkv, qkv, qkv)


# ----------------------------------------------------------------------------------
# Parameter construction (synthetic, deterministic).  Weights are stored directly in
# kernel layout: conv3d -> (27, Cin, Cout) bf16, linear/1x1 -> (Cin, Cout) bf16.
# qkv projection columns are [all-q heads | all-k heads | all-v heads] (head-major);
# loading real torch weights would require the corresponding column permutation.
# ----------------------------------------------------------------------------------
class ParamGen:
    def __init__(self, seed):
        self.key = jax.random.PRNGKey(seed)
        self.n = 0

    def normal(self, shape, scale):
        k = jax.random.fold_in(self.key, self.n)
        self.n += 1
        return scale * jax.random.normal(k, shape, jnp.float32)


def init_conv3d(pg, cin, cout):
    fan = cin * 27
    w = pg.normal((27, cin, cout), 1.0 / math.sqrt(fan)).astype(jnp.bfloat16)
    return (w, jnp.zeros((cout,), jnp.float32))


def init_linear(pg, din, dout):
    w = pg.normal((din, dout), 1.0 / math.sqrt(din)).astype(jnp.bfloat16)
    return (w, jnp.zeros((dout,), jnp.float32))


def init_gn(c):
    return (jnp.ones((c,), jnp.float32), jnp.zeros((c,), jnp.float32))


def init_resblock(pg, cin, cout, emb_dim):
    p = {'in_gn': init_gn(cin),
         'in_conv': init_conv3d(pg, cin, cout),
         'emb_lin': init_linear(pg, emb_dim, cout),
         'out_gn': init_gn(cout),
         'out_conv': init_conv3d(pg, cout, cout)}  # torch: zero_module -> random here
    if cin != cout:
        p['skip'] = init_linear(pg, cin, cout)     # 1x1x1 skip projection
    return p


def init_attn(pg, c):
    return {'gn': init_gn(c),
            'qkv': init_linear(pg, c, 3 * c),
            'proj': init_linear(pg, c, c)}         # torch: zero_module -> random here


def build_unet_params(seed=0):
    pg = ParamGen(seed)
    mc, emb_dim = 128, 512
    cmult, nres, attn_res = (1, 2, 4), 3, (4, 8)
    P = {'time_lin1': init_linear(pg, mc, emb_dim),
         'time_lin2': init_linear(pg, emb_dim, emb_dim),
         'task_lin1': init_linear(pg, 512, emb_dim),
         'task_lin2': init_linear(pg, emb_dim, emb_dim)}

    input_blocks = [[{'conv': init_conv3d(pg, 6, mc)}]]
    ch, chans, ds = mc, [mc], 1
    for level, mult in enumerate(cmult):
        for _ in range(nres):
            layers = [{'res': init_resblock(pg, ch, mult * mc, emb_dim)}]
            ch = mult * mc
            if ds in attn_res:
                layers.append({'attn': init_attn(pg, ch)})
            input_blocks.append(layers)
            chans.append(ch)
        if level != len(cmult) - 1:
            input_blocks.append([{'down': init_conv3d(pg, ch, ch)}])
            chans.append(ch)
            ds *= 2
    P['input_blocks'] = input_blocks

    P['middle'] = [{'res': init_resblock(pg, ch, ch, emb_dim)},
                   {'attn': init_attn(pg, ch)},
                   {'res': init_resblock(pg, ch, ch, emb_dim)}]

    output_blocks = []
    for level, mult in list(enumerate(cmult))[::-1]:
        for i in range(nres + 1):
            ich = chans.pop()
            layers = [{'res': init_resblock(pg, ch + ich, mc * mult, emb_dim)}]
            ch = mc * mult
            if ds in attn_res:
                layers.append({'attn': init_attn(pg, ch)})
            if level and i == nres:
                layers.append({'up': init_conv3d(pg, ch, ch)})
                ds //= 2
            output_blocks.append(layers)
    P['output_blocks'] = output_blocks

    P['out_gn'] = init_gn(mc)
    P['out_conv'] = init_conv3d(pg, mc, 3)         # torch: zero_module -> random here
    return P


# ----------------------------------------------------------------------------------
# Forward pass (feature maps channels-last bf16: (B, F, H, W, C))
# ----------------------------------------------------------------------------------
def silu(x):
    return x * jax.nn.sigmoid(x)


def timestep_embedding(t, dim, max_period=10000.0):
    half = dim // 2
    freqs = jnp.exp(-math.log(max_period) *
                    jnp.arange(half, dtype=jnp.float32) / half)
    args = t.astype(jnp.float32)[:, None] * freqs[None, :]
    return jnp.concatenate([jnp.cos(args), jnp.sin(args)], axis=-1)


def resblock_fwd(x, emb, p):
    h = group_norm(x, p['in_gn'], apply_silu=True)
    h = conv3d(h, p['in_conv'])
    e = linear(silu(emb), p['emb_lin'])                         # (B, Cout) f32
    h = group_norm(h, p['out_gn'], apply_silu=True, add=e)      # emb add fused into GN
    h = conv3d(h, p['out_conv'])                                # dropout(p=0) is identity
    skip = conv1x1(x, p['skip']) if 'skip' in p else x
    return skip + h


def attn_fwd(x, p):
    B, F, H, W, C = x.shape
    T = F * H * W
    nh = C // 32                                                # num_head_channels = 32
    xf = x.reshape(B, T, C)
    h = group_norm(xf, p['gn'], apply_silu=False)
    qkv = matmul_bias(h.reshape(B * T, C), p['qkv'][0], p['qkv'][1])   # (B*T, 3C) bf16
    a = pallas_attention(qkv.reshape(B, T, 3 * C), num_heads=nh)       # (B, T, C) bf16
    hproj = matmul_bias(a.reshape(B * T, C), p['proj'][0], p['proj'][1])
    return (xf + hproj.reshape(B, T, C)).reshape(x.shape)


def upsample_fwd(x, p):
    # TODO(synk): fold the nearest-neighbor x2 upsample into the following conv's
    # input DMA instead of two XLA repeats (only 2 occurrences in the network).
    x = jnp.repeat(jnp.repeat(x, 2, axis=2), 2, axis=3)
    return conv3d(x, p)


def apply_layer(kind, p, h, emb):
    if kind == 'conv':
        return conv3d(h, p)
    if kind == 'res':
        return resblock_fwd(h, emb, p)
    if kind == 'attn':
        return attn_fwd(h, p)
    if kind == 'down':
        return conv3d(h, p, stride_hw=2)
    if kind == 'up':
        return upsample_fwd(h, p)
    raise ValueError(kind)


def unet_forward(P, x, t, task_embed):
    emb = timestep_embedding(t, 128)
    emb = linear(emb, P['time_lin1'], act="silu")
    emb = linear(emb, P['time_lin2'])
    if task_embed is not None:
        # TODO(synk): exact AVDC task-token fusion (UNetModel internals not shown in
        # the provided source) — approximated as per-token MLP -> mean-pool -> add.
        B, N, D = task_embed.shape
        te = linear(task_embed.reshape(B * N, D), P['task_lin1'], act="silu")
        te = linear(te, P['task_lin2'])
        emb = emb + te.reshape(B, N, -1).mean(axis=1)

    hs = []
    h = x
    for layers in P['input_blocks']:
        for layer in layers:
            (kind, p), = layer.items()
            h = apply_layer(kind, p, h, emb)
        hs.append(h)
    for layer in P['middle']:
        (kind, p), = layer.items()
        h = apply_layer(kind, p, h, emb)
    for layers in P['output_blocks']:
        h = jnp.concatenate([h, hs.pop()], axis=-1)
        for layer in layers:
            (kind, p), = layer.items()
            h = apply_layer(kind, p, h, emb)
    h = group_norm(h, P['out_gn'], apply_silu=True)
    return conv3d(h, P['out_conv'], out_f32=True)


def unet_thor_forward(P, x, t, task_embed=None):
    B, C, H, W = x.shape
    f = C // 3 - 1
    # rearrange(x[:, :-3], 'b (f c) h w -> b f h w c', c=3)
    x_main = x[:, :-3].reshape(B, f, 3, H, W).transpose(0, 1, 3, 4, 2)
    # repeat(x[:, -3:], 'b c h w -> b f h w c', f=f)
    x_cond = jnp.broadcast_to(x[:, -3:].transpose(0, 2, 3, 1)[:, None],
                              (B, f, H, W, 3))
    xin = jnp.concatenate([x_main, x_cond], axis=-1)        # (B, f, H, W, 6)
    out = unet_forward(P, xin, t, task_embed)               # (B, f, H, W, 3) f32
    # rearrange(out, 'b f h w c -> b (f c) h w')
    return out.transpose(0, 1, 4, 2, 3).reshape(B, f * 3, H, W)


# ----------------------------------------------------------------------------------
if __name__ == "__main__":
    params = build_unet_params(seed=0)

    B, f, H, W = 2, 2, 16, 16
    k1, k2, k3 = jax.random.split(jax.random.PRNGKey(0), 3)
    x = jax.random.normal(k1, (B, 3 * (f + 1), H, W), jnp.float32)
    t = jnp.array([3.0, 11.0], jnp.float32)[:B]
    task_embed = jax.random.normal(k3, (B, 4, 512), jnp.float32)   # 4 CLIP-style tokens

    fwd = jax.jit(unet_thor_forward)
    out = fwd(params, x, t, task_embed)
    out = jax.block_until_ready(out)
    assert out.shape == (B, 3 * f, H, W), out.shape
    assert bool(jnp.all(jnp.isfinite(out)))
    print("KERNEL_OK")
</pallas_src>

<mosaic_0001>
module attributes {stable_mosaic.version = 11 : i64} {
  func.func @_matmul_kernel(%arg0: i32, %arg1: i32, %arg2: i32, %arg3: memref<2x128xf32, #tpu.memory_space<vmem>>, %arg4: memref<128x512xbf16, #tpu.memory_space<vmem>>, %arg5: memref<1x512xf32, #tpu.memory_space<vmem>>, %arg6: memref<2x512xf32, #tpu.memory_space<vmem>>, %arg7: memref<2x512xf32, #tpu.memory_space<vmem>>) attributes {dimension_semantics = [#tpu.dimension_semantics<parallel>, #tpu.dimension_semantics<parallel>, #tpu.dimension_semantics<arbitrary>], iteration_bounds = array<i64: 1, 1, 1>, scalar_prefetch = 0 : i64, scratch_operands = 1 : i64, tpu.core_type = #tpu.core_type<tc>, window_params = [{transform_indices = @transform_0, window_bounds = array<i64: 2, 128>}, {transform_indices = @transform_1, window_bounds = array<i64: 128, 512>}, {transform_indices = @transform_2, window_bounds = array<i64: 1, 512>}, {transform_indices = @transform_3, window_bounds = array<i64: 2, 512>}]} {
    %c0_i32 = arith.constant 0 : i32
    %0 = arith.cmpi eq, %arg2, %c0_i32 : i32
    %1 = arith.extui %0 : i1 to i32
    %c0_i32_0 = arith.constant 0 : i32
    %2 = arith.cmpi ne, %1, %c0_i32_0 : i32
    scf.if %2 {
      %cst_10 = arith.constant 0.000000e+00 : f32
      %13 = vector.broadcast %cst_10 : f32 to vector<2x512xf32>
      %c0_11 = arith.constant 0 : index
      %c0_12 = arith.constant 0 : index
      %14 = vector.load %arg7[%c0_11, %c0_12] : memref<2x512xf32, #tpu.memory_space<vmem>>, vector<2x512xf32>
      tpu.vector_store %arg7[%c0_11, %c0_12], %13 {strides = array<i32>} : memref<2x512xf32, #tpu.memory_space<vmem>>, vector<2x512xf32>,
    } else {
    }
    %c0 = arith.constant 0 : index
    %c0_1 = arith.constant 0 : index
    %3 = vector.load %arg7[%c0, %c0_1] : memref<2x512xf32, #tpu.memory_space<vmem>>, vector<2x512xf32>
    %c0_2 = arith.constant 0 : index
    %c0_3 = arith.constant 0 : index
    %4 = vector.load %arg3[%c0_2, %c0_3] : memref<2x128xf32, #tpu.memory_space<vmem>>, vector<2x128xf32>
    %5 = arith.truncf %4 : vector<2x128xf32> to vector<2x128xbf16>
    %c0_4 = arith.constant 0 : index
    %c0_5 = arith.constant 0 : index
    %6 = vector.load %arg4[%c0_4, %c0_5] : memref<128x512xbf16, #tpu.memory_space<vmem>>, vector<128x512xbf16>
    %cst = arith.constant dense<0.000000e+00> : vector<2x512xf32>
    %7 = tpu.matmul %5, %6, %cst {dimension_numbers = #tpu.dot_dimension_numbers<[1], [0], [0], [1], [0, 0, 1, 1], [], []>} : vector<2x128xbf16>, vector<128x512xbf16>, vector<2x512xf32> -> vector<2x512xf32>
    %8 = arith.addf %3, %7 : vector<2x512xf32>
    %c0_6 = arith.constant 0 : index
    %c0_7 = arith.constant 0 : index
    %9 = vector.load %arg7[%c0_6, %c0_7] : memref<2x512xf32, #tpu.memory_space<vmem>>, vector<2x512xf32>
    tpu.vector_store %arg7[%c0_6, %c0_7], %8 {strides = array<i32>} : memref<2x512xf32, #tpu.memory_space<vmem>>, vector<2x512xf32>,
    %c0_i32_8 = arith.constant 0 : i32
    %10 = arith.cmpi eq, %arg2, %c0_i32_8 : i32
    %11 = arith.extui %10 : i1 to i32
    %c0_i32_9 = arith.constant 0 : i32
    %12 = arith.cmpi ne, %11, %c0_i32_9 : i32
    scf.if %12 {
      %c0_10 = arith.constant 0 : index
      %c0_11 = arith.constant 0 : index
      %13 = vector.load %arg7[%c0_10, %c0_11] : memref<2x512xf32, #tpu.memory_space<vmem>>, vector<2x512xf32>
      %c0_12 = arith.constant 0 : index
      %c0_13 = arith.constant 0 : index
      %14 = vector.load %arg5[%c0_12, %c0_13] : memref<1x512xf32, #tpu.memory_space<vmem>>, vector<1x512xf32>
      %15 = vector.broadcast %14 : vector<1x512xf32> to vector<2x512xf32>
      %16 = arith.addf %13, %15 : vector<2x512xf32>
      %17 = arith.negf %16 : vector<2x512xf32>
      %18 = math.exp %17 : vector<2x512xf32>
      %cst_14 = arith.constant 1.000000e+00 : f32
      %19 = vector.broadcast %cst_14 : f32 to vector<2x512xf32>
      %20 = arith.addf %19, %18 : vector<2x512xf32>
      %21 = arith.divf %19, %20 : vector<2x512xf32>
      %22 = arith.mulf %16, %21 : vector<2x512xf32>
      %c0_15 = arith.constant 0 : index
      %c0_16 = arith.constant 0 : index
      %23 = vector.load %arg6[%c0_15, %c0_16] : memref<2x512xf32, #tpu.memory_space<vmem>>, vector<2x512xf32>
      tpu.vector_store %arg6[%c0_15, %c0_16], %22 {strides = array<i32>} : memref<2x512xf32, #tpu.memory_space<vmem>>, vector<2x512xf32>,
    } else {
    }
    return
  }
  func.func @transform_0(%arg0: i32, %arg1: i32, %arg2: i32) -> (i32, i32) {
    %c0_i32 = arith.constant 0 : i32
    return %arg0, %arg2 : i32, i32
  }
  func.func @transform_1(%arg0: i32, %arg1: i32, %arg2: i32) -> (i32, i32) {
    %c0_i32 = arith.constant 0 : i32
    return %arg2, %arg1 : i32, i32
  }
  func.func @transform_2(%arg0: i32, %arg1: i32, %arg2: i32) -> (i32, i32) {
    %c0_i32 = arith.constant 0 : i32
    %c0_i32_0 = arith.constant 0 : i32
    return %c0_i32, %arg1 : i32, i32
  }
  func.func @transform_3(%arg0: i32, %arg1: i32, %arg2: i32) -> (i32, i32) {
    %c0_i32 = arith.constant 0 : i32
    return %arg0, %arg1 : i32, i32
  }
}

</mosaic_0001>

<llo_original>
// kernel: _matmul_bias.1
$region0: #{_matmul_bias.1}
  #allocation0 [shape = 'u32[]', space=smem, size = 0x4, offset = 0x4, fixed_abs, tag = 'smem constant byte address 0x4 - core index']
  #allocation1 [shape = 'u32[144,128]{1,0:T(1,128)}', space=vmem, size = 0x12000, scoped, tag = 'internal scratch']
  #allocation2 [shape = 'f32[2,512]{1,0:T(2,128)}', space=vmem, size = 0x1000, scoped, tag = 'scratch operand']
  %s0 = inlined_call_operand.vmem [shape: f32[2,128], index: 0, kind: input, shape index: {}]
  %s1 = inlined_call_operand.hbm [shape: bf16[128,512], index: 1, kind: input, shape index: {}]
  %s2 = inlined_call_operand.vmem [shape: f32[1,512], index: 2, kind: input, shape index: {}]
  %s3 = inlined_call_operand.hbm [shape: f32[2,512], index: 3, kind: output, shape index: {}]
  %s4 = sld [smem:[#allocation0]]
  $region34: #{_matmul_bias.1} parent=0
    _
  %s6 = ssub.s32 1, %s4
  %s7 = scalar_select 0, %s6, %s4
  $region1: #{_matmul_bias.1} parent=0
    #allocation3 [shape = 'u8[131072]{0}', space=vmem, size = 0x20000, scoped, tag = 'input window, operand 1, single buffered']
    #allocation4 [shape = 's32[1]{0}', space=sflag, size = 0x4, scoped, tag = 'scoped memory for _matmul_bias.1']
    #allocation5 [shape = 's32[1]{0}', space=sflag, size = 0x4, scoped, tag = 'scoped memory for _matmul_bias.1']
    #allocation6 [shape = 'u8[4096]{0}', space=vmem, size = 0x1000, scoped, tag = 'output window, operand 0, single buffered']
    %8 = vsyncpa [#allocation4], 0
    %9 = vsyncpa [#allocation5], 0
    // Predicated region
    $region2: #{_matmul_bias.1} parent=1 // pred_check
      _
    $region3: #{_matmul_bias.1} parent=1 // pred_check_branch
      %11 = sbr.rel (0) target = $region5
    $region4: #{_matmul_bias.1} parent=1 // pred_region
      _
    $region5: #{_matmul_bias.1} parent=1 // pred_fallthru
      _
    // Predicated region
    $region6: #{_matmul_bias.1} parent=1 // pred_check
      _
    $region7: #{_matmul_bias.1} parent=1 // pred_check_branch
      %13 = sbr.rel (0) target = $region9
    $region8: #{_matmul_bias.1} parent=1 // pred_region
      %s15 = ssub.s32 4096, 4096
      %16 = vsyncadd [#allocation4], %s15
      %s17 = sshll.u32 [#allocation3], 4
      %s18 = int_to_ptr.vmem [resolvable:$true] %s17
      %23 = dma.hbm_to_vmem [thread:$0]  %s1, 4096, %s18, [#allocation4], 256, 256, 16
    $region9: #{_matmul_bias.1} parent=1 // pred_fallthru
      _
    // Predicated region
    $region10: #{_matmul_bias.1} parent=1 // pred_check
      _
    $region11: #{_matmul_bias.1} parent=1 // pred_check_branch
      %25 = sbr.rel (0) target = $region13
    $region12: #{_matmul_bias.1} parent=1 // pred_region
      _
    $region13: #{_matmul_bias.1} parent=1 // pred_fallthru
      _
    // Predicated region
    $region14: #{_matmul_bias.1} parent=1 // pred_check
      _
    $region15: #{_matmul_bias.1} parent=1 // pred_check_branch
      %27 = sbr.rel (0) target = $region17
    $region16: #{_matmul_bias.1} parent=1 // pred_region
      %28 = dma.done [#allocation4], 4096
    $region17: #{_matmul_bias.1} parent=1 // pred_fallthru
      _
    %p30 = scmp.eq.s32.totalorder 0, 0
    // Predicated region
    $region18: #{_matmul_bias.1} parent=1 // pred_check
      %p31 = pneg %p30
    $region19: #{_matmul_bias.1} parent=1 // pred_check_branch
      %33 = sbr.rel (%p31) target = $region21
    $region20: #{_matmul_bias.1} parent=1 // pred_region
      %34 = vst [vmem:[#allocation2] sm:$0xff] 0.0
    $region21: #{_matmul_bias.1} parent=1 // pred_fallthru
      _
    %v35 = vld [vmem:[#allocation2] sm:$0xff]
    %v36 = vld [vmem:[%s0] sm:$0x3]
    %v37 = vpack.c.bf16 %v36, %v36
    %v38 = vld [vmem:[#allocation3] sm:$0xff]
    %v39 = vld [vmem:[#allocation3 + $0x8] sm:$0xff]
    %v40 = vld [vmem:[#allocation3 + $0x10] sm:$0xff]
    %v41 = vld [vmem:[#allocation3 + $0x18] sm:$0xff]
    %v42 = vld [vmem:[#allocation3 + $0x20] sm:$0xff]
    %v43 = vld [vmem:[#allocation3 + $0x28] sm:$0xff]
    %v44 = vld [vmem:[#allocation3 + $0x30] sm:$0xff]
    %v45 = vld [vmem:[#allocation3 + $0x38] sm:$0xff]
    %v46 = vld [vmem:[#allocation3 + $0x40] sm:$0xff]
    %v47 = vld [vmem:[#allocation3 + $0x48] sm:$0xff]
    %v48 = vld [vmem:[#allocation3 + $0x50] sm:$0xff]
    %v49 = vld [vmem:[#allocation3 + $0x58] sm:$0xff]
    %v50 = vld [vmem:[#allocation3 + $0x60] sm:$0xff]
    %v51 = vld [vmem:[#allocation3 + $0x68] sm:$0xff]
    %v52 = vld [vmem:[#allocation3 + $0x70] sm:$0xff]
    %v53 = vld [vmem:[#allocation3 + $0x78] sm:$0xff]
    %v54 = vld [vmem:[#allocation3 + $0x80] sm:$0xff]
    %v55 = vld [vmem:[#allocation3 + $0x88] sm:$0xff]
    %v56 = vld [vmem:[#allocation3 + $0x90] sm:$0xff]
    %v57 = vld [vmem:[#allocation3 + $0x98] sm:$0xff]
    %v58 = vld [vmem:[#allocation3 + $0xa0] sm:$0xff]
    %v59 = vld [vmem:[#allocation3 + $0xa8] sm:$0xff]
    %v60 = vld [vmem:[#allocation3 + $0xb0] sm:$0xff]
    %v61 = vld [vmem:[#allocation3 + $0xb8] sm:$0xff]
    %v62 = vld [vmem:[#allocation3 + $0xc0] sm:$0xff]
    %v63 = vld [vmem:[#allocation3 + $0xc8] sm:$0xff]
    %v64 = vld [vmem:[#allocation3 + $0xd0] sm:$0xff]
    %v65 = vld [vmem:[#allocation3 + $0xd8] sm:$0xff]
    %v66 = vld [vmem:[#allocation3 + $0xe0] sm:$0xff]
    %v67 = vld [vmem:[#allocation3 + $0xe8] sm:$0xff]
    %v68 = vld [vmem:[#allocation3 + $0xf0] sm:$0xff]
    %v69 = vld [vmem:[#allocation3 + $0xf8] sm:$0xff]
    %v102 = vunpack.c.l.b16 %v38
    %v103 = vunpack.c.h.b16 %v38
    %v104 = vunpack.c.l.b16 %v39
    %v105 = vunpack.c.h.b16 %v39
    %v106 = vunpack.c.l.b16 %v40
    %v107 = vunpack.c.h.b16 %v40
    %v108 = vunpack.c.l.b16 %v41
    %v109 = vunpack.c.h.b16 %v41
    %v110 = vunpack.c.l.b16 %v42
    %v111 = vunpack.c.h.b16 %v42
    %v112 = vunpack.c.l.b16 %v43
    %v113 = vunpack.c.h.b16 %v43
    %v114 = vunpack.c.l.b16 %v44
    %v115 = vunpack.c.h.b16 %v44
    %v116 = vunpack.c.l.b16 %v45
    %v117 = vunpack.c.h.b16 %v45
    %v118 = vunpack.c.l.b16 %v46
    %v119 = vunpack.c.h.b16 %v46
    %v120 = vunpack.c.l.b16 %v47
    %v121 = vunpack.c.h.b16 %v47
    %v122 = vunpack.c.l.b16 %v48
    %v123 = vunpack.c.h.b16 %v48
    %v124 = vunpack.c.l.b16 %v49
    %v125 = vunpack.c.h.b16 %v49
    %v126 = vunpack.c.l.b16 %v50
    %v127 = vunpack.c.h.b16 %v50
    %v128 = vunpack.c.l.b16 %v51
    %v129 = vunpack.c.h.b16 %v51
    %v130 = vunpack.c.l.b16 %v52
    %v131 = vunpack.c.h.b16 %v52
    %v132 = vunpack.c.l.b16 %v53
    %v133 = vunpack.c.h.b16 %v53
    %v134 = vunpack.c.l.b16 %v54
    %v135 = vunpack.c.h.b16 %v54
    %v136 = vunpack.c.l.b16 %v55
    %v137 = vunpack.c.h.b16 %v55
    %v138 = vunpack.c.l.b16 %v56
    %v139 = vunpack.c.h.b16 %v56
    %v140 = vunpack.c.l.b16 %v57
    %v141 = vunpack.c.h.b16 %v57
    %v142 = vunpack.c.l.b16 %v58
    %v143 = vunpack.c.h.b16 %v58
    %v144 = vunpack.c.l.b16 %v59
    %v145 = vunpack.c.h.b16 %v59
    %v146 = vunpack.c.l.b16 %v60
    %v147 = vunpack.c.h.b16 %v60
    %v148 = vunpack.c.l.b16 %v61
    %v149 = vunpack.c.h.b16 %v61
    %v150 = vunpack.c.l.b16 %v62
    %v151 = vunpack.c.h.b16 %v62
    %v152 = vunpack.c.l.b16 %v63
    %v153 = vunpack.c.h.b16 %v63
    %v154 = vunpack.c.l.b16 %v64
    %v155 = vunpack.c.h.b16 %v64
    %v156 = vunpack.c.l.b16 %v65
    %v157 = vunpack.c.h.b16 %v65
    %v158 = vunpack.c.l.b16 %v66
    %v159 = vunpack.c.h.b16 %v66
    %v160 = vunpack.c.l.b16 %v67
    %v161 = vunpack.c.h.b16 %v67
    %v162 = vunpack.c.l.b16 %v68
    %v163 = vunpack.c.h.b16 %v68
    %v164 = vunpack.c.l.b16 %v69
    %v165 = vunpack.c.h.b16 %v69
    %v166 = vpack.c.b16 %v106, %v102
    %v167 = vpack.c.b16 %v107, %v103
    %v168 = vpack.c.b16 %v108, %v104
    %v169 = vpack.c.b16 %v109, %v105
    %v170 = vpack.c.b16 %v114, %v110
    %v171 = vpack.c.b16 %v115, %v111
    %v172 = vpack.c.b16 %v116, %v112
    %v173 = vpack.c.b16 %v117, %v113
    %v174 = vpack.c.b16 %v122, %v118
    %v175 = vpack.c.b16 %v123, %v119
    %v176 = vpack.c.b16 %v124, %v120
    %v177 = vpack.c.b16 %v125, %v121
    %v178 = vpack.c.b16 %v130, %v126
    %v179 = vpack.c.b16 %v131, %v127
    %v180 = vpack.c.b16 %v132, %v128
    %v181 = vpack.c.b16 %v133, %v129
    %v182 = vpack.c.b16 %v138, %v134
    %v183 = vpack.c.b16 %v139, %v135
    %v184 = vpack.c.b16 %v140, %v136
    %v185 = vpack.c.b16 %v141, %v137
    %v186 = vpack.c.b16 %v146, %v142
    %v187 = vpack.c.b16 %v147, %v143
    %v188 = vpack.c.b16 %v148, %v144
    %v189 = vpack.c.b16 %v149, %v145
    %v190 = vpack.c.b16 %v154, %v150
    %v191 = vpack.c.b16 %v155, %v151
    %v192 = vpack.c.b16 %v156, %v152
    %v193 = vpack.c.b16 %v157, %v153
    %v194 = vpack.c.b16 %v162, %v158
    %v195 = vpack.c.b16 %v163, %v159
    %v196 = vpack.c.b16 %v164, %v160
    %v197 = vpack.c.b16 %v165, %v161
    %230 = vmatprep.subr.bf16.mxu0 %v167
    %231 = vmatpush1.bf16.msra.mxu0 %v166
    %232 = vmatprep.subr.bf16.mxu0 %v171
    %233 = vmatpush1.bf16.msra.mxu0 %v170
    %234 = vmatprep.subr.bf16.mxu0 %v175
    %235 = vmatpush1.bf16.msra.mxu0 %v174
    %236 = vmatprep.subr.bf16.mxu0 %v179
    %237 = vmatpush1.bf16.msra.mxu0 %v178
    %238 = vmatprep.subr.bf16.mxu0 %v183
    %239 = vmatpush1.bf16.msra.mxu0 %v182
    %240 = vmatprep.subr.bf16.mxu0 %v187
    %241 = vmatpush1.bf16.msra.mxu0 %v186
    %242 = vmatprep.subr.bf16.mxu0 %v191
    %243 = vmatpush1.bf16.msra.mxu0 %v190
    %244 = vmatprep.subr.bf16.mxu0 %v195
    %245 = vmatpush1.bf16.msra.mxu0 %v194
    %246 = vmatprep.subr.bf16.mxu0 0
    %247 = vmatpush1.bf16.msra.mxu0 0
    %248 = vmatprep.subr.bf16.mxu0 0
    %249 = vmatpush1.bf16.msra.mxu0 0
    %250 = vmatprep.subr.bf16.mxu0 0
    %251 = vmatpush1.bf16.msra.mxu0 0
    %252 = vmatprep.subr.bf16.mxu0 0
    %253 = vmatpush1.bf16.msra.mxu0 0
    %254 = vmatprep.subr.bf16.mxu0 0
    %255 = vmatpush1.bf16.msra.mxu0 0
    %256 = vmatprep.subr.bf16.mxu0 0
    %257 = vmatpush1.bf16.msra.mxu0 0
    %258 = vmatprep.subr.bf16.mxu0 0
    %259 = vmatpush1.bf16.msra.mxu0 0
    %260 = vmatprep.subr.bf16.mxu0 0
    %261 = vmatpush1.bf16.msra.mxu0 0
    %262 = vmatprep.mubr.bf16.mxu0 0
    %263 = vmatmul.mubr.bf16.gmra.mrb[0].mxu0 %v37
    %v264 = vpop.f32.mrb[0].mxu0
    %v265 = vadd.f32 0.0, %v264
    %v266 = vpop.f32.mrb[0].mxu0
    %v267 = vadd.f32 0.0, %v266
    %v268 = vpop.f32.mrb[0].mxu0
    %v269 = vpop.f32.mrb[0].mxu0
    %270 = vdwg.mxu0
    %271 = vmatprep.subr.bf16.mxu0 %v169
    %272 = vmatpush1.bf16.msra.mxu0 %v168
    %273 = vmatprep.subr.bf16.mxu0 %v173
    %274 = vmatpush1.bf16.msra.mxu0 %v172
    %275 = vmatprep.subr.bf16.mxu0 %v177
    %276 = vmatpush1.bf16.msra.mxu0 %v176
    %277 = vmatprep.subr.bf16.mxu0 %v181
    %278 = vmatpush1.bf16.msra.mxu0 %v180
    %279 = vmatprep.subr.bf16.mxu0 %v185
    %280 = vmatpush1.bf16.msra.mxu0 %v184
    %281 = vmatprep.subr.bf16.mxu0 %v189
    %282 = vmatpush1.bf16.msra.mxu0 %v188
    %283 = vmatprep.subr.bf16.mxu0 %v193
    %284 = vmatpush1.bf16.msra.mxu0 %v192
    %285 = vmatprep.subr.bf16.mxu0 %v197
    %286 = vmatpush1.bf16.msra.mxu0 %v196
    %287 = vmatprep.subr.bf16.mxu0 0
    %288 = vmatpush1.bf16.msra.mxu0 0
    %289 = vmatprep.subr.bf16.mxu0 0
    %290 = vmatpush1.bf16.msra.mxu0 0
    %291 = vmatprep.subr.bf16.mxu0 0
    %292 = vmatpush1.bf16.msra.mxu0 0
    %293 = vmatprep.subr.bf16.mxu0 0
    %294 = vmatpush1.bf16.msra.mxu0 0
    %295 = vmatprep.subr.bf16.mxu0 0
    %296 = vmatpush1.bf16.msra.mxu0 0
    %297 = vmatprep.subr.bf16.mxu0 0
    %298 = vmatpush1.bf16.msra.mxu0 0
    %299 = vmatprep.subr.bf16.mxu0 0
    %300 = vmatpush1.bf16.msra.mxu0 0
    %301 = vmatprep.subr.bf16.mxu0 0
    %302 = vmatpush1.bf16.msra.mxu0 0
    %303 = vmatprep.mubr.bf16.mxu0 0
    %304 = vmatmul.mubr.bf16.gmra.mrb[0].mxu0 %v37
    %v305 = vpop.f32.mrb[0].mxu0
    %v306 = vadd.f32 0.0, %v305
    %v307 = vpop.f32.mrb[0].mxu0
    %v308 = vadd.f32 0.0, %v307
    %v309 = vpop.f32.mrb[0].mxu0
    %v310 = vpop.f32.mrb[0].mxu0
    %311 = vdwg.mxu0
    %v316 = vcombine.low %v265, %v267
    %v317 = vcombine.low %v306, %v308
    %v319 = vunpack.c.l.s4 1983009808
    %v320 = vunpack.c.0.s8 %v319
    %v321 = vlaneseq
    %v322 = vshrl.u32 %v321, 7
    %v323 = vsub.s32 %v320, %v322
    %v324 = vrot.slane %v316, %v323
    %v326 = vunpack.c.l.s4 1983009808
    %v327 = vunpack.c.0.s8 %v326
    %v328 = vlaneseq
    %v329 = vshrl.u32 %v328, 7
    %v330 = vsub.s32 %v327, %v329
    %v331 = vrot.slane %v317, %v330
    %v332 = vcombine.low %v324, %v331
    %v334 = vadd.f32 %v35, %v332
    %335 = vst [vmem:[#allocation2] sm:$0xff] %v334
    // Predicated region
    $region22: #{_matmul_bias.1} parent=1 // pred_check
      %p336 = pneg %p30
    $region23: #{_matmul_bias.1} parent=1 // pred_check_branch
      %338 = sbr.rel (%p336) target = $region25
    $region24: #{_matmul_bias.1} parent=1 // pred_region
      %v339 = vld [vmem:[#allocation2] sm:$0xff]
      %v340 = vld [vmem:[%s2] sm:$0xf]
      %v342 = vlaneseq
      %v343 = vshrl.u32 %v342, 7
      %v344 = vsub.s32 0, %v343
      %v345 = vrot.slane %v340, %v344
      %v346 = vlaneseq
      %v347 = vshrl.u32 %v346, 7
      %v348 = vsub.s32 1, %v347
      %v349 = vrot.slane %v340, %v348
      %v350 = vlaneseq
      %v351 = vshrl.u32 %v350, 7
      %v352 = vsub.s32 2, %v351
      %v353 = vrot.slane %v340, %v352
      %v354 = vlaneseq
      %v355 = vshrl.u32 %v354, 7
      %v356 = vsub.s32 3, %v355
      %v357 = vrot.slane %v340, %v356
      %v358 = vcombine.low %v345, %v349
      %v359 = vcombine.low %v353, %v357
      %v361 = vunpack.c.l.s4 1983009808
      %v362 = vunpack.c.0.s8 %v361
      %v363 = vlaneseq
      %v364 = vshrl.u32 %v363, 7
      %v365 = vsub.s32 %v362, %v364
      %v366 = vrot.slane %v358, %v365
      %v368 = vunpack.c.l.s4 1983009808
      %v369 = vunpack.c.0.s8 %v368
      %v370 = vlaneseq
      %v371 = vshrl.u32 %v370, 7
      %v372 = vsub.s32 %v369, %v371
      %v373 = vrot.slane %v359, %v372
      %v374 = vcombine.low %v366, %v373
      %v376 = vadd.f32 %v339, %v374
      %v377 = vxor.u32 %v376, 2147483648
      %v378 = vmul.f32 %v377, 1.442695
      %v379 = vpow.pop %v378
      %v380 = vadd.f32 %v379, 1.0
      %v381 = vrcp.pop %v380
      %v382 = vmul.f32 1.0, %v381
      %v383 = vmul.f32 %v376, %v382
      %384 = vst [vmem:[#allocation6] sm:$0xff] %v383
    $region25: #{_matmul_bias.1} parent=1 // pred_fallthru
      _
    // Predicated region
    $region26: #{_matmul_bias.1} parent=1 // pred_check
      _
    $region27: #{_matmul_bias.1} parent=1 // pred_check_branch
      %386 = sbr.rel (0) target = $region29
    $region28: #{_matmul_bias.1} parent=1 // pred_region
      %s388 = ssub.s32 128, 128
      %389 = vsyncadd [#allocation5], %s388
      %s391 = sshll.u32 [#allocation6], 4
      %s392 = int_to_ptr.vmem [resolvable:$true] %s391
      %394 = dma.vmem_to_hbm [thread:$0]  %s392, 128, %s3, [#allocation5]
    $region29: #{_matmul_bias.1} parent=1 // pred_fallthru
      _
    // Predicated region
    $region30: #{_matmul_bias.1} parent=1 // pred_check
      _
    $region31: #{_matmul_bias.1} parent=1 // pred_check_branch
      %396 = sbr.rel (0) target = $region33
    $region32: #{_matmul_bias.1} parent=1 // pred_region
      %397 = dma.done [#allocation5], 128
    $region33: #{_matmul_bias.1} parent=1 // pred_fallthru
      _
    %398 = vsyncpa [#allocation4], 1
    %399 = vsyncpa [#allocation5], 1

</llo_original>
